<compile_context>
chip_gen: v6e
topology: v6e:2x2x1
jax: 0.10.0
libtpu: 0.0.40
codegen_flags: <defaults>
</compile_context>

<pallas_src>
import functools

import jax
import jax.numpy as jnp
from jax.experimental import pallas as pl
from jax.experimental.pallas import tpu as pltpu


_ACC_LANES = 128                      # lane width of the f32 partial-sum accumulator
_TARGET_TILE_BYTES = 2 * 1024 * 1024  # aim for >= 2 MB x tiles in the two-pass path
_MAX_BLOCK_S = 8192                   # keeps the unrolled accumulate loop bounded


def _vmem_limit_bytes():
    """~3/4 of physical VMEM, capped: v5e/v6e (128 MiB) -> 96 MiB, v7x (64 MiB) -> 48 MiB."""
    cap = 64 * 1024 * 1024
    try:
        cap = int(pltpu.get_tpu_info().vmem_capacity_bytes)
    except Exception:
        pass
    return max(32 * 1024 * 1024, min((cap * 3) // 4, 96 * 1024 * 1024))


# ----------------------------------------------------------------------------
# Kernels
# ----------------------------------------------------------------------------

def _fused_gating_kernel(x_ref, w_ref, b_ref, o_ref, acc_ref, *, s_total):
    """Single-read path. One grid step per batch; the (1, C, S) slab stays VMEM-resident.

    x_ref/o_ref: (1, C, S); w_ref: (C, C) torch weight (out, in); b_ref: (C, 1) f32;
    acc_ref: (C, 128) f32 scratch holding per-lane partial sums.
    """
    S = x_ref.shape[2]
    acc_ref[...] = jnp.zeros_like(acc_ref)

    nk, rem = S // _ACC_LANES, S % _ACC_LANES
    if nk > 0:
        def body(j, carry):
            off = pl.multiple_of(j * _ACC_LANES, _ACC_LANES)
            acc_ref[...] += x_ref[0, :, pl.ds(off, _ACC_LANES)].astype(jnp.float32)
            return carry
        jax.lax.fori_loop(0, nk, body, 0)
    if rem > 0:
        tail = x_ref[0, :, pl.ds(nk * _ACC_LANES, rem)].astype(jnp.float32)
        acc_ref[:, pl.ds(0, rem)] += tail

    # gate = sigmoid(W @ mean + b).  Reduce AFTER the matmul: one cross-lane sum per batch.
    w = w_ref[...].astype(jnp.float32)
    pw = jax.lax.dot_general(w, acc_ref[...], (((1,), (0,)), ((), ())),
                             preferred_element_type=jnp.float32)            # (C, 128)
    g = jnp.sum(pw, axis=1, keepdims=True) * jnp.float32(1.0 / s_total)     # (C, 1)
    gate = jax.nn.sigmoid(g + b_ref[...])                                   # (C, 1) f32
    o_ref[...] = (x_ref[...] * gate[None]).astype(o_ref.dtype)


def _mean_gate_kernel(x_ref, w_ref, b_ref, gate_ref, acc_ref, *,
                      s_total, block_s, needs_mask):
    """Two-pass path, pass 1: tiled channel-sum + fused gate FC in the finalize.

    x_ref: (1, C, block_s) tile; w_ref: (C, C); b_ref: (C, 1) f32;
    gate_ref: (1, C, 1) f32 output, resident across the (last, 'arbitrary') S axis;
    acc_ref: (C, 128) f32 scratch (lane-dense partial sums, VALU only in steady state).
    """
    s = pl.program_id(1)
    last = pl.num_programs(1) - 1
    C = x_ref.shape[1]

    @pl.when(s == 0)
    def _init():
        acc_ref[...] = jnp.zeros_like(acc_ref)

    chunked = (block_s % _ACC_LANES) == 0

    def accumulate(mask_tail):
        if chunked:
            for j in range(block_s // _ACC_LANES):
                chunk = x_ref[0, :, pl.ds(j * _ACC_LANES, _ACC_LANES)].astype(jnp.float32)
                if mask_tail:
                    lane = jax.lax.broadcasted_iota(jnp.int32, (C, _ACC_LANES), 1)
                    valid = (s * block_s + j * _ACC_LANES + lane) < s_total
                    chunk = jnp.where(valid, chunk, 0.0)   # select -> OOB garbage/NaN is safe
                acc_ref[...] += chunk
        else:
            # Single small tile spanning the whole (non-128-multiple) spatial axis.
            x = x_ref[0].astype(jnp.float32)                             # (C, block_s)
            acc_ref[:, pl.ds(0, 1)] += jnp.sum(x, axis=1, keepdims=True)

    if needs_mask:
        @pl.when(s == last)
        def _tail():
            accumulate(True)

        @pl.when(s != last)
        def _steady():
            accumulate(False)
    else:
        accumulate(False)

    @pl.when(s == last)
    def _finalize():
        w = w_ref[...].astype(jnp.float32)
        pw = jax.lax.dot_general(w, acc_ref[...], (((1,), (0,)), ((), ())),
                                 preferred_element_type=jnp.float32)        # (C, 128)
        g = jnp.sum(pw, axis=1, keepdims=True) * jnp.float32(1.0 / s_total)  # (C, 1)
        gate_ref[0] = jax.nn.sigmoid(g + b_ref[...])


def _scale_kernel(x_ref, gate_ref, o_ref):
    """Two-pass path, pass 2: lane-dense broadcast multiply. x: (1, C, block_s), gate: (1, C, 1)."""
    o_ref[...] = (x_ref[...] * gate_ref[...]).astype(o_ref.dtype)


# ----------------------------------------------------------------------------
# Wrapper
# ----------------------------------------------------------------------------

def _choose_block_s(S, C, itemsize, block_s):
    if block_s is None:
        bs = (_TARGET_TILE_BYTES // max(1, C * itemsize)) // _ACC_LANES * _ACC_LANES
        bs = max(_ACC_LANES, min(bs, _MAX_BLOCK_S))
    else:
        bs = block_s
    bs = min(bs, S)
    if bs != S:
        bs = max(_ACC_LANES, (bs // _ACC_LANES) * _ACC_LANES)
    return bs


def self_gating(x_ncdhw, fc_w, fc_b, *, block_s=None, path="auto"):
    """S3D-G SelfGating forward.

    x_ncdhw : (N, C, D, H, W)  PyTorch layout
    fc_w    : (C, C) torch nn.Linear weight (out_features, in_features)  (used untransposed)
    fc_b    : (C,)   torch nn.Linear bias
    path    : "auto" | "fused" | "two_pass"
    returns : (N, C, D, H, W), same dtype as x
    """
    N, C, D, H, W = x_ncdhw.shape
    S = D * H * W
    x = x_ncdhw.reshape(N, C, S)            # free reshape: C on sublanes, spatial on lanes
    b_col = fc_b.astype(jnp.float32).reshape(C, 1)
    vmem_limit = _vmem_limit_bytes()

    itemsize = jnp.dtype(x.dtype).itemsize
    slab_bytes = C * S * itemsize
    w_bytes = C * C * jnp.dtype(fc_w.dtype).itemsize
    # fused path holds: 2x double-buffered input slab + 2x output slab + weights + scratch
    fused_need = 4 * slab_bytes + 2 * w_bytes + C * _ACC_LANES * 4 + (1 << 20)
    use_fused = (path == "fused") or (path == "auto" and fused_need <= int(0.8 * vmem_limit))

    if use_fused:
        out = pl.pallas_call(
            functools.partial(_fused_gating_kernel, s_total=S),
            out_shape=jax.ShapeDtypeStruct((N, C, S), x.dtype),
            grid=(N,),
            in_specs=[
                pl.BlockSpec((1, C, S), lambda n: (n, 0, 0)),
                pl.BlockSpec((C, C), lambda n: (0, 0)),
                pl.BlockSpec((C, 1), lambda n: (0, 0)),
            ],
            out_specs=pl.BlockSpec((1, C, S), lambda n: (n, 0, 0)),
            scratch_shapes=[pltpu.VMEM((C, _ACC_LANES), jnp.float32)],
            compiler_params=pltpu.CompilerParams(
                dimension_semantics=("parallel",),
                vmem_limit_bytes=vmem_limit),
        )(x, fc_w, b_col)
        return out.reshape(N, C, D, H, W)

    # ---- two-pass fallback ---------------------------------------------------
    bs = _choose_block_s(S, C, itemsize, block_s)
    n_s = pl.cdiv(S, bs)
    needs_mask = (S % bs) != 0

    # pass 1: tiled channel sums + gate FC fused into the finalize
    gate = pl.pallas_call(
        functools.partial(_mean_gate_kernel, s_total=S, block_s=bs,
                          needs_mask=needs_mask),
        out_shape=jax.ShapeDtypeStruct((N, C, 1), jnp.float32),
        grid=(N, n_s),
        in_specs=[
            pl.BlockSpec((1, C, bs), lambda n, s: (n, 0, s)),
            pl.BlockSpec((C, C), lambda n, s: (0, 0)),
            pl.BlockSpec((C, 1), lambda n, s: (0, 0)),
        ],
        out_specs=pl.BlockSpec((1, C, 1), lambda n, s: (n, 0, 0)),
        scratch_shapes=[pltpu.VMEM((C, _ACC_LANES), jnp.float32)],
        compiler_params=pltpu.CompilerParams(
            dimension_semantics=("parallel", "arbitrary"),
            vmem_limit_bytes=vmem_limit),
    )(x, fc_w, b_col)

    # pass 2: tiled broadcast multiply
    out = pl.pallas_call(
        _scale_kernel,
        out_shape=jax.ShapeDtypeStruct((N, C, S), x.dtype),
        grid=(N, n_s),
        in_specs=[
            pl.BlockSpec((1, C, bs), lambda n, s: (n, 0, s)),
            pl.BlockSpec((1, C, 1), lambda n, s: (n, 0, 0)),
        ],
        out_specs=pl.BlockSpec((1, C, bs), lambda n, s: (n, 0, s)),
        compiler_params=pltpu.CompilerParams(
            dimension_semantics=("parallel", "parallel"),
            vmem_limit_bytes=vmem_limit),
    )(x, gate)

    return out.reshape(N, C, D, H, W)


# ----------------------------------------------------------------------------
# Pure-JAX reference (matches the PyTorch module)
# ----------------------------------------------------------------------------

def self_gating_ref(x, fc_w, fc_b):
    m = jnp.mean(x, axis=(2, 3, 4))
    g = jax.nn.sigmoid(
        jnp.dot(m, fc_w.T, precision=jax.lax.Precision.HIGHEST) + fc_b)
    return x * g[:, :, None, None, None]


# ----------------------------------------------------------------------------
# Self-test
# ----------------------------------------------------------------------------

if __name__ == "__main__":
    key = jax.random.PRNGKey(0)
    keys = jax.random.split(key, 9)

    # Case 1: N=2, C=32, D=4, H=8, W=8 (S=256) — exercises the fused single-read path
    N, C, D, H, W = 2, 32, 4, 8, 8
    x = jax.random.normal(keys[0], (N, C, D, H, W), jnp.float32)
    fc_w = 0.2 * jax.random.normal(keys[1], (C, C), jnp.float32)
    fc_b = 0.2 * jax.random.normal(keys[2], (C,), jnp.float32)

    ref1 = self_gating_ref(x, fc_w, fc_b)

    out1 = jax.block_until_ready(self_gating(x, fc_w, fc_b))                  # auto -> fused
    assert out1.shape == x.shape, out1.shape
    err1 = float(jnp.max(jnp.abs(out1 - ref1)))
    assert jnp.allclose(out1, ref1, rtol=2e-3, atol=2e-3), err1

    out1b = jax.block_until_ready(self_gating(x, fc_w, fc_b, path="two_pass"))  # forced fallback
    err1b = float(jnp.max(jnp.abs(out1b - ref1)))
    assert jnp.allclose(out1b, ref1, rtol=2e-3, atol=2e-3), err1b

    # Case 2: two-pass with S=168 not a multiple of the 128-lane tile (cdiv grid + masked tail)
    N2, C2, D2, H2, W2 = 2, 16, 3, 7, 8   # S = 168
    x2 = jax.random.normal(keys[3], (N2, C2, D2, H2, W2), jnp.float32)
    fc_w2 = 0.2 * jax.random.normal(keys[4], (C2, C2), jnp.float32)
    fc_b2 = 0.2 * jax.random.normal(keys[5], (C2,), jnp.float32)

    out2 = jax.block_until_ready(
        self_gating(x2, fc_w2, fc_b2, block_s=128, path="two_pass"))
    ref2 = self_gating_ref(x2, fc_w2, fc_b2)
    err2 = float(jnp.max(jnp.abs(out2 - ref2)))
    assert jnp.allclose(out2, ref2, rtol=2e-3, atol=2e-3), err2

    # Case 3: two-pass with a single small spatial tile (S=75 < 128, non-chunked path)
    N3, C3, D3, H3, W3 = 1, 8, 3, 5, 5    # S = 75
    x3 = jax.random.normal(keys[6], (N3, C3, D3, H3, W3), jnp.float32)
    fc_w3 = 0.2 * jax.random.normal(keys[7], (C3, C3), jnp.float32)
    fc_b3 = 0.2 * jax.random.normal(keys[8], (C3,), jnp.float32)

    out3 = jax.block_until_ready(self_gating(x3, fc_w3, fc_b3, path="two_pass"))
    ref3 = self_gating_ref(x3, fc_w3, fc_b3)
    err3 = float(jnp.max(jnp.abs(out3 - ref3)))
    assert jnp.allclose(out3, ref3, rtol=2e-3, atol=2e-3), err3

    print("KERNEL_OK")
</pallas_src>

<mosaic_0001>
module attributes {stable_mosaic.version = 11 : i64} {
  func.func @_fused_gating_kernel(%arg0: i32, %arg1: memref<1x32x256xf32, #tpu.memory_space<vmem>>, %arg2: memref<32x32xf32, #tpu.memory_space<vmem>>, %arg3: memref<32x1xf32, #tpu.memory_space<vmem>>, %arg4: memref<1x32x256xf32, #tpu.memory_space<vmem>>, %arg5: memref<32x128xf32, #tpu.memory_space<vmem>>) attributes {dimension_semantics = [#tpu.dimension_semantics<parallel>], iteration_bounds = array<i64: 2>, scalar_prefetch = 0 : i64, scratch_operands = 1 : i64, tpu.core_type = #tpu.core_type<tc>, window_params = [{transform_indices = @transform_0, window_bounds = array<i64: 1, 32, 256>}, {pipeline_mode = #tpu.pipeline_mode<synchronous>, transform_indices = @transform_1, window_bounds = array<i64: 32, 32>}, {pipeline_mode = #tpu.pipeline_mode<synchronous>, transform_indices = @transform_2, window_bounds = array<i64: 32, 1>}, {transform_indices = @transform_3, window_bounds = array<i64: 1, 32, 256>}]} {
    %cst = arith.constant 0.000000e+00 : f32
    %0 = vector.broadcast %cst : f32 to vector<32x128xf32>
    %c0 = arith.constant 0 : index
    %c0_0 = arith.constant 0 : index
    %1 = vector.load %arg5[%c0, %c0_0] : memref<32x128xf32, #tpu.memory_space<vmem>>, vector<32x128xf32>
    tpu.vector_store %arg5[%c0, %c0_0], %0 {strides = array<i32>} : memref<32x128xf32, #tpu.memory_space<vmem>>, vector<32x128xf32>,
    %c0_i32 = arith.constant 0 : i32
    %c2_i32 = arith.constant 2 : i32
    %2 = arith.addi %c0_i32, %c2_i32 : i32
    %c1_i32 = arith.constant 1 : i32
    scf.for %arg6 = %c0_i32 to %2 step %c1_i32  : i32 {
      %c128_i32 = arith.constant 128 : i32
      %22 = arith.muli %arg6, %c128_i32 : i32
      %23 = tpu.assume_multiple %22, 128 : i32
      %c0_18 = arith.constant 0 : index
      %c0_19 = arith.constant 0 : index
      %24 = vector.load %arg5[%c0_18, %c0_19] : memref<32x128xf32, #tpu.memory_space<vmem>>, vector<32x128xf32>
      %c0_20 = arith.constant 0 : index
      %c0_21 = arith.constant 0 : index
      %25 = arith.index_cast %23 : i32 to index
      %26 = vector.load %arg1[%c0_20, %c0_21, %25] : memref<1x32x256xf32, #tpu.memory_space<vmem>>, vector<1x32x128xf32>
      %27 = vector.shape_cast %26 : vector<1x32x128xf32> to vector<32x128xf32>
      %28 = arith.addf %24, %27 : vector<32x128xf32>
      %c0_22 = arith.constant 0 : index
      %c0_23 = arith.constant 0 : index
      %29 = vector.load %arg5[%c0_22, %c0_23] : memref<32x128xf32, #tpu.memory_space<vmem>>, vector<32x128xf32>
      tpu.vector_store %arg5[%c0_22, %c0_23], %28 {strides = array<i32>} : memref<32x128xf32, #tpu.memory_space<vmem>>, vector<32x128xf32>,
    }
    %c2_i32_1 = arith.constant 2 : i32
    %c0_2 = arith.constant 0 : index
    %c0_3 = arith.constant 0 : index
    %3 = vector.load %arg2[%c0_2, %c0_3] : memref<32x32xf32, #tpu.memory_space<vmem>>, vector<32x32xf32>
    %c0_4 = arith.constant 0 : index
    %c0_5 = arith.constant 0 : index
    %4 = vector.load %arg5[%c0_4, %c0_5] : memref<32x128xf32, #tpu.memory_space<vmem>>, vector<32x128xf32>
    %cst_6 = arith.constant dense<0.000000e+00> : vector<32x128xf32>
    %5 = tpu.matmul %3, %4, %cst_6 {dimension_numbers = #tpu.dot_dimension_numbers<[1], [0], [0], [1], [0, 0, 1, 1], [], []>} : vector<32x32xf32>, vector<32x128xf32>, vector<32x128xf32> -> vector<32x128xf32>
    %cst_7 = arith.constant dense<0.000000e+00> : vector<32xf32>
    %6 = vector.multi_reduction <add>, %5, %cst_7 [1] : vector<32x128xf32> to vector<32xf32>
    %7 = vector.shape_cast %6 : vector<32xf32> to vector<32x1xf32>
    %cst_8 = arith.constant 3.906250e-03 : f32
    %8 = vector.broadcast %cst_8 : f32 to vector<32x1xf32>
    %9 = arith.mulf %7, %8 : vector<32x1xf32>
    %c0_9 = arith.constant 0 : index
    %c0_10 = arith.constant 0 : index
    %10 = vector.load %arg3[%c0_9, %c0_10] : memref<32x1xf32, #tpu.memory_space<vmem>>, vector<32x1xf32>
    %11 = arith.addf %9, %10 : vector<32x1xf32>
    %12 = arith.negf %11 : vector<32x1xf32>
    %13 = math.exp %12 : vector<32x1xf32>
    %cst_11 = arith.constant 1.000000e+00 : f32
    %14 = vector.broadcast %cst_11 : f32 to vector<32x1xf32>
    %15 = arith.addf %14, %13 : vector<32x1xf32>
    %16 = arith.divf %14, %15 : vector<32x1xf32>
    %c0_12 = arith.constant 0 : index
    %c0_13 = arith.constant 0 : index
    %c0_14 = arith.constant 0 : index
    %17 = vector.load %arg1[%c0_12, %c0_13, %c0_14] : memref<1x32x256xf32, #tpu.memory_space<vmem>>, vector<1x32x256xf32>
    %18 = vector.shape_cast %16 : vector<32x1xf32> to vector<1x32x1xf32>
    %19 = vector.broadcast %18 : vector<1x32x1xf32> to vector<1x32x256xf32>
    %20 = arith.mulf %17, %19 : vector<1x32x256xf32>
    %c0_15 = arith.constant 0 : index
    %c0_16 = arith.constant 0 : index
    %c0_17 = arith.constant 0 : index
    %21 = vector.load %arg4[%c0_15, %c0_16, %c0_17] : memref<1x32x256xf32, #tpu.memory_space<vmem>>, vector<1x32x256xf32>
    tpu.vector_store %arg4[%c0_15, %c0_16, %c0_17], %20 {strides = array<i32>} : memref<1x32x256xf32, #tpu.memory_space<vmem>>, vector<1x32x256xf32>,
    return
  }
  func.func @transform_0(%arg0: i32) -> (i32, i32, i32) {
    %c0_i32 = arith.constant 0 : i32
    %c0_i32_0 = arith.constant 0 : i32
    %c0_i32_1 = arith.constant 0 : i32
    return %arg0, %c0_i32, %c0_i32_0 : i32, i32, i32
  }
  func.func @transform_1(%arg0: i32) -> (i32, i32) {
    %c0_i32 = arith.constant 0 : i32
    %c0_i32_0 = arith.constant 0 : i32
    %c0_i32_1 = arith.constant 0 : i32
    return %c0_i32, %c0_i32_0 : i32, i32
  }
  func.func @transform_2(%arg0: i32) -> (i32, i32) {
    %c0_i32 = arith.constant 0 : i32
    %c0_i32_0 = arith.constant 0 : i32
    %c0_i32_1 = arith.constant 0 : i32
    return %c0_i32, %c0_i32_0 : i32, i32
  }
  func.func @transform_3(%arg0: i32) -> (i32, i32, i32) {
    %c0_i32 = arith.constant 0 : i32
    %c0_i32_0 = arith.constant 0 : i32
    %c0_i32_1 = arith.constant 0 : i32
    return %arg0, %c0_i32, %c0_i32_0 : i32, i32, i32
  }
}

</mosaic_0001>

<llo_original>
// kernel: tpu_custom_call.1
$region0: #{tpu_custom_call.1}
  #allocation0 [shape = 'u32[]', space=smem, size = 0x4, offset = 0x4, fixed_abs, tag = 'smem constant byte address 0x4 - core index']
  #allocation1 [shape = 'u32[144,128]{1,0:T(1,128)}', space=vmem, size = 0x12000, scoped, tag = 'internal scratch']
  #allocation2 [shape = 'f32[32,128]{1,0:T(8,128)}', space=vmem, size = 0x4000, scoped, tag = 'scratch operand']
  %s0 = inlined_call_operand.hbm [shape: f32[2,32,256], index: 0, kind: input, shape index: {}]
  %s1 = inlined_call_operand.vmem [shape: f32[32,32], index: 1, kind: input, shape index: {}]
  %s2 = inlined_call_operand.vmem [shape: f32[32,1], index: 2, kind: input, shape index: {}]
  %s3 = inlined_call_operand.hbm [shape: f32[2,32,256], index: 3, kind: output, shape index: {}]
  %s4 = sld [smem:[#allocation0]]
  $region56: #{tpu_custom_call.1} parent=0
    _
  %s6 = ssub.s32 1, %s4
  %s7 = scalar_select 0, %s6, %s4
  $region1: #{tpu_custom_call.1} parent=0
    #allocation3 [shape = 'u8[65536]{0}', space=vmem, size = 0x10000, scoped, tag = 'input window, operand 0']
    #allocation4 [shape = 's32[2]{0}', space=sflag, size = 0x8, scoped, tag = 'scoped memory for tpu_custom_call.1']
    #allocation5 [shape = 's32[2]{0}', space=sflag, size = 0x8, scoped, tag = 'scoped memory for tpu_custom_call.1']
    #allocation6 [shape = 'u8[65536]{0}', space=vmem, size = 0x10000, scoped, tag = 'output window, operand 0']
    %8 = vsyncpa [#allocation4], 0
    %s9 = scalar_lea.sflag [#allocation4], 1
    %10 = vsyncpa %s9, 0
    %11 = vsyncpa [#allocation5], 0
    %s12 = scalar_lea.sflag [#allocation5], 1
    %13 = vsyncpa %s12, 0
    loop: start=0, step=1, limit=4
    $region2: #{tpu_custom_call.1} parent=1 // loop_pre_header
      _
    $region3: #{tpu_custom_call.1} parent=1 // loop_header
      %s15 = sphi 0, %s19
      %p16 = scmp.ge.s32.totalorder %s15, 4
      %s25 = sphi 0, %s27
      %s28 = sphi 0, %s25
      %s29 = sphi 0, %s28
      %s45 = sphi 0, %s29
      %s49 = sphi 0, %s49
      %s51 = sphi 0, %s49
      %s52 = sphi 0, %s51
      %s66 = sphi 0, %s52
      %s70 = sphi 0, %s70
      %s72 = sphi 0, %s70
      %s73 = sphi 0, %s72
      %s87 = sphi 0, %s73
      %s93 = sphi 0, %s95
      %s96 = sphi 0, %s93
      %s97 = sphi 0, %s96
      %s113 = sphi 0, %s97
    $region4: #{tpu_custom_call.1} parent=1 // loop_header_branch
      %18 = sbr.rel (%p16) target = $region8
    $region5: #{tpu_custom_call.1} parent=1 // loop_body
      %s20 = ssub.s32 %s15, 1
      %s21 = ssub.s32 %s15, 2
      %s22 = sadd.s32 %s15, 1
      %s23 = ssub.s32 %s15, %s22
      %p24 = scmp.eq.s32.totalorder %s23, 0
      %s26 = sadd.s32 %s25, 1
      %s27 = scalar_select %p24, %s25, %s26
      %p30 = pneg %p24
      %p31 = scmp.eq.s32.totalorder %s15, 1
      %p32 = por %p30, %p31
      %p33 = scmp.ne.s32.totalorder %s25, %s28
      %p34 = scmp.eq.s32.totalorder %s15, 0
      %p35 = por %p33, %p34
      %p36 = scmp.ne.s32.totalorder %s25, %s28
      %p37 = scmp.eq.s32.totalorder %s20, 1
      %p38 = por %p36, %p37
      %p39 = scmp.ne.s32.totalorder %s28, %s29
      %p40 = scmp.eq.s32.totalorder %s20, 0
      %p41 = por %p39, %p40
      %p42 = scmp.ne.s32.totalorder %s28, %s29
      %p43 = scmp.eq.s32.totalorder %s21, 1
      %p44 = por %p42, %p43
      %p46 = scmp.ne.s32.totalorder %s29, %s45
      %p47 = scmp.eq.s32.totalorder %s21, 0
      %p48 = por %p46, %p47
      %s50 = sadd.s32 %s49, 1
      %p53 = scmp.eq.s32.totalorder %s15, 1
      %p54 = scmp.ne.s32.totalorder %s49, %s51
      %p55 = scmp.eq.s32.totalorder %s15, 0
      %p56 = por %p54, %p55
      %p57 = scmp.ne.s32.totalorder %s49, %s51
      %p58 = scmp.eq.s32.totalorder %s20, 1
      %p59 = por %p57, %p58
      %p60 = scmp.ne.s32.totalorder %s51, %s52
      %p61 = scmp.eq.s32.totalorder %s20, 0
      %p62 = por %p60, %p61
      %p63 = scmp.ne.s32.totalorder %s51, %s52
      %p64 = scmp.eq.s32.totalorder %s21, 1
      %p65 = por %p63, %p64
      %p67 = scmp.ne.s32.totalorder %s52, %s66
      %p68 = scmp.eq.s32.totalorder %s21, 0
      %p69 = por %p67, %p68
      %s71 = sadd.s32 %s70, 1
      %p74 = scmp.eq.s32.totalorder %s15, 1
      %p75 = scmp.ne.s32.totalorder %s70, %s72
      %p76 = scmp.eq.s32.totalorder %s15, 0
      %p77 = por %p75, %p76
      %p78 = scmp.ne.s32.totalorder %s70, %s72
      %p79 = scmp.eq.s32.totalorder %s20, 1
      %p80 = por %p78, %p79
      %p81 = scmp.ne.s32.totalorder %s72, %s73
      %p82 = scmp.eq.s32.totalorder %s20, 0
      %p83 = por %p81, %p82
      %p84 = scmp.ne.s32.totalorder %s72, %s73
      %p85 = scmp.eq.s32.totalorder %s21, 1
      %p86 = por %p84, %p85
      %p88 = scmp.ne.s32.totalorder %s73, %s87
      %p89 = scmp.eq.s32.totalorder %s21, 0
      %p90 = por %p88, %p89
      %s91 = ssub.s32 %s15, %s22
      %p92 = scmp.eq.s32.totalorder %s91, 0
      %s94 = sadd.s32 %s93, 1
      %s95 = scalar_select %p92, %s93, %s94
      %p98 = pneg %p92
      %p99 = scmp.eq.s32.totalorder %s15, 1
      %p100 = por %p98, %p99
      %p101 = scmp.ne.s32.totalorder %s93, %s96
      %p102 = scmp.eq.s32.totalorder %s15, 0
      %p103 = por %p101, %p102
      %p104 = scmp.ne.s32.totalorder %s93, %s96
      %p105 = scmp.eq.s32.totalorder %s20, 1
      %p106 = por %p104, %p105
      %p107 = scmp.ne.s32.totalorder %s96, %s97
      %p108 = scmp.eq.s32.totalorder %s20, 0
      %p109 = por %p107, %p108
      %p110 = scmp.ne.s32.totalorder %s96, %s97
      %p111 = scmp.eq.s32.totalorder %s21, 1
      %p112 = por %p110, %p111
      %p114 = scmp.ne.s32.totalorder %s97, %s113
      %p115 = scmp.eq.s32.totalorder %s21, 0
      %p116 = por %p114, %p115
      %p117 = scmp.le.s32.totalorder 1, %s15
      %p118 = scmp.lt.s32.totalorder %s15, 3
      %p119 = pnand %p117, %p118
      %p120 = pneg %p119
      // Predicated region
      $region9: #{tpu_custom_call.1} parent=5 // pred_check
        _
      $region10: #{tpu_custom_call.1} parent=5 // pred_check_branch
        %122 = sbr.rel (%p119) target = $region12
      $region11: #{tpu_custom_call.1} parent=5 // pred_region
        %s123 = ssub.s32 %s15, 1
        // Predicated region
        $region13: #{tpu_custom_call.1} parent=11 // pred_check
          %p124 = pneg %p62
        $region14: #{tpu_custom_call.1} parent=11 // pred_check_branch
          %126 = sbr.rel (%p124) target = $region16
        $region15: #{tpu_custom_call.1} parent=11 // pred_region
          _
        $region16: #{tpu_custom_call.1} parent=11 // pred_fallthru
          _
        // Predicated region
        $region17: #{tpu_custom_call.1} parent=11 // pred_check
          %p127 = pneg %p83
        $region18: #{tpu_custom_call.1} parent=11 // pred_check_branch
          %129 = sbr.rel (%p127) target = $region20
        $region19: #{tpu_custom_call.1} parent=11 // pred_region
          _
        $region20: #{tpu_custom_call.1} parent=11 // pred_fallthru
          _
      $region12: #{tpu_custom_call.1} parent=5 // pred_fallthru
        _
      %p130 = scmp.lt.s32.totalorder %s15, 2
      // Predicated region
      $region21: #{tpu_custom_call.1} parent=5 // pred_check
        %p131 = pneg %p130
      $region22: #{tpu_custom_call.1} parent=5 // pred_check_branch
        %133 = sbr.rel (%p131) target = $region24
      $region23: #{tpu_custom_call.1} parent=5 // pred_region
        // Predicated region
        $region25: #{tpu_custom_call.1} parent=23 // pred_check
          %p134 = pneg %p35
        $region26: #{tpu_custom_call.1} parent=23 // pred_check_branch
          %136 = sbr.rel (%p134) target = $region28
        $region27: #{tpu_custom_call.1} parent=23 // pred_region
          %s137 = sand.u32 %s25, 1
          %s138 = scalar_lea.sflag [#allocation4], %s137
          %s139 = sand.u32 %s25, 1
          %s140 = smul.addr %s139, 64
          %s141 = scalar_lea.vmem [#allocation3], %s140
          %s143 = ssub.s32 1024, 1024
          %144 = vsyncadd %s138, %s143
          %s145 = smul.addr %s15, 8
          %s146 = smul.addr %s145, 128
          %s147 = scalar_lea.hbm %s0, %s146
          %s148 = sshll.u32 %s141, 4
          %s149 = int_to_ptr.vmem [resolvable:$true] %s148
          %154 = dma.hbm_to_vmem [thread:$0]  %s147, 1024, %s149, %s138, 256, 256, 16
        $region28: #{tpu_custom_call.1} parent=23 // pred_fallthru
          _
      $region24: #{tpu_custom_call.1} parent=5 // pred_fallthru
        _
      %p155 = scmp.le.s32.totalorder 1, %s15
      %p156 = scmp.lt.s32.totalorder %s15, 3
      %p157 = pnand %p155, %p156
      %p158 = pneg %p157
      // Predicated region
      $region29: #{tpu_custom_call.1} parent=5 // pred_check
        _
      $region30: #{tpu_custom_call.1} parent=5 // pred_check_branch
        %160 = sbr.rel (%p157) target = $region32
      $region31: #{tpu_custom_call.1} parent=5 // pred_region
        %s161 = ssub.s32 %s15, 1
        %s162 = sand.u32 %s28, 1
        %s163 = scalar_lea.sflag [#allocation4], %s162
        %s164 = sand.u32 %s28, 1
        %s165 = smul.addr %s164, 64
        %s166 = scalar_lea.vmem [#allocation3], %s165
        // Predicated region
        $region33: #{tpu_custom_call.1} parent=31 // pred_check
          %p167 = pneg %p41
        $region34: #{tpu_custom_call.1} parent=31 // pred_check_branch
          %169 = sbr.rel (%p167) target = $region36
        $region35: #{tpu_custom_call.1} parent=31 // pred_region
          %170 = dma.done %s163, 1024
        $region36: #{tpu_custom_call.1} parent=31 // pred_fallthru
          _
        %s171 = sand.u32 %s28, 1
        %s172 = scalar_lea.sflag [#allocation4], %s171
        %s173 = sand.u32 %s28, 1
        %s174 = smul.addr %s173, 64
        %s175 = scalar_lea.vmem [#allocation3], %s174
        %p176 = pneg %p41
        %p177 = pneg %p38
        %p178 = pneg %p62
        %p179 = pneg %p59
        %p180 = pneg %p83
        %p181 = pneg %p80
        %p182 = pneg %p109
        %p183 = pneg %p106
        %s184 = sand.u32 %s96, 1
        %s185 = scalar_lea.sflag [#allocation5], %s184
        %s186 = sand.u32 %s96, 1
        %s187 = smul.addr %s186, 64
        %s188 = scalar_lea.vmem [#allocation6], %s187
        %189 = vst [vmem:[#allocation2] sm:$0xff] 0.0
        %190 = vst [vmem:[#allocation2 + $0x8] sm:$0xff] 0.0
        %191 = vst [vmem:[#allocation2 + $0x10] sm:$0xff] 0.0
        %192 = vst [vmem:[#allocation2 + $0x18] sm:$0xff] 0.0
        loop: start=0, step=1, limit=2
        $region37: #{tpu_custom_call.1} parent=31 // loop_pre_header
          _
        $region38: #{tpu_custom_call.1} parent=31 // loop_header
          %s194 = sphi 0, %s198
          %p195 = scmp.ge.s32.totalorder %s194, 2
        $region39: #{tpu_custom_call.1} parent=31 // loop_header_branch
          %197 = sbr.rel (%p195) target = $region43
        $region40: #{tpu_custom_call.1} parent=31 // loop_body
          %s199 = smul.u32 %s194, 128
          %v200 = vld [vmem:[#allocation2] sm:$0xff]
          %v201 = vld [vmem:[#allocation2 + $0x8] sm:$0xff]
          %v202 = vld [vmem:[#allocation2 + $0x10] sm:$0xff]
          %v203 = vld [vmem:[#allocation2 + $0x18] sm:$0xff]
          %s204 = sshra.s32 %s199, 7
          %s205 = sand.u32 %s199, 127
          %s206 = smul.addr %s204, 8
          %s207 = scalar_lea.vmem %s166, %s206 [#allocation3]
          %v208 = vld [vmem:[%s207] sm:$0xff]
          %v209 = vld [vmem:[%s207 + $0x10] sm:$0xff]
          %v210 = vld [vmem:[%s207 + $0x20] sm:$0xff]
          %v211 = vld [vmem:[%s207 + $0x30] sm:$0xff]
          %v212 = vadd.f32 %v200, %v208
          %v213 = vadd.f32 %v201, %v209
          %v214 = vadd.f32 %v202, %v210
          %v215 = vadd.f32 %v203, %v211
          %216 = vst [vmem:[#allocation2] sm:$0xff] %v212
          %217 = vst [vmem:[#allocation2 + $0x8] sm:$0xff] %v213
          %218 = vst [vmem:[#allocation2 + $0x10] sm:$0xff] %v214
          %219 = vst [vmem:[#allocation2 + $0x18] sm:$0xff] %v215
        $region41: #{tpu_custom_call.1} parent=31 // loop_footer
          %s198 = sadd.s32 1, %s194
        $region42: #{tpu_custom_call.1} parent=31 // loop_footer_branch
          %193 = sbr.rel target = $region38
        $region43: #{tpu_custom_call.1} parent=31 // loop_exit
          _
        %v220 = vld [vmem:[%s1] sm:$0xff]
        %v221 = vld [vmem:[%s1 + $0x8] sm:$0xff]
        %v222 = vld [vmem:[%s1 + $0x10] sm:$0xff]
        %v223 = vld [vmem:[%s1 + $0x18] sm:$0xff]
        %v224 = vld [vmem:[#allocation2] sm:$0xff]
        %v225 = vld [vmem:[#allocation2 + $0x8] sm:$0xff]
        %v226 = vld [vmem:[#allocation2 + $0x10] sm:$0xff]
        %v227 = vld [vmem:[#allocation2 + $0x18] sm:$0xff]
        %vm228 = vcmask 261120
        %v230 = vsel %vm228, %v220, 0
        %v233 = vsel %vm228, %v221, 0
        %v236 = vsel %vm228, %v222, 0
        %v239 = vsel %vm228, %v223, 0
        %241 = vmatprep.subr.mxu0 0.0
        %242 = vmatpush1.msra.mxu0 0.0
        %243 = vmatprep.subr.mxu0 0.0
        %244 = vmatpush1.msra.mxu0 0.0
        %245 = vmatprep.subr.mxu0 0.0
        %246 = vmatpush1.msra.mxu0 0.0
        %247 = vmatprep.subr.mxu0 0.0
        %248 = vmatpush1.msra.mxu0 0.0
        %249 = vmatprep.subr.mxu0 0.0
        %250 = vmatpush1.msra.mxu0 0.0
        %251 = vmatprep.subr.mxu0 0.0
        %252 = vmatpush1.msra.mxu0 0.0
        %253 = vmatprep.subr.mxu0 0.0
        %254 = vmatpush1.msra.mxu0 0.0
        %255 = vmatprep.subr.mxu0 0.0
        %256 = vmatpush1.msra.mxu0 0.0
        %257 = vmatprep.subr.mxu0 0.0
        %258 = vmatpush1.msra.mxu0 0.0
        %259 = vmatprep.subr.mxu0 0.0
        %260 = vmatpush1.msra.mxu0 0.0
        %261 = vmatprep.subr.mxu0 0.0
        %262 = vmatpush1.msra.mxu0 0.0
        %263 = vmatprep.subr.mxu0 0.0
        %264 = vmatpush1.msra.mxu0 0.0
        %265 = vmatprep.subr.mxu0 0.0
        %266 = vmatpush1.msra.mxu0 %v227
        %267 = vmatprep.subr.mxu0 0.0
        %268 = vmatpush1.msra.mxu0 %v226
        %269 = vmatprep.subr.mxu0 0.0
        %270 = vmatpush1.msra.mxu0 %v225
        %271 = vmatprep.subr.mxu0 0.0
        %272 = vmatpush1.msra.mxu0 %v224
        %273 = vmatprep.subr.mxu0 0.0
        %274 = vmatpush2.msra.mxu0 0.0
        %275 = vmatprep.subr.mxu0 0.0
        %276 = vmatpush2.msra.mxu0 0.0
        %277 = vmatprep.subr.mxu0 0.0
        %278 = vmatpush2.msra.mxu0 0.0
        %279 = vmatprep.subr.mxu0 0.0
        %280 = vmatpush2.msra.mxu0 0.0
        %281 = vmatprep.subr.mxu0 0.0
        %282 = vmatpush2.msra.mxu0 0.0
        %283 = vmatprep.subr.mxu0 0.0
        %284 = vmatpush2.msra.mxu0 0.0
        %285 = vmatprep.subr.mxu0 0.0
        %286 = vmatpush2.msra.mxu0 0.0
        %287 = vmatprep.subr.mxu0 0.0
        %288 = vmatpush2.msra.mxu0 0.0
        %289 = vmatprep.subr.mxu0 0.0
        %290 = vmatpush2.msra.mxu0 0.0
        %291 = vmatprep.subr.mxu0 0.0
        %292 = vmatpush2.msra.mxu0 0.0
        %293 = vmatprep.subr.mxu0 0.0
        %294 = vmatpush2.msra.mxu0 0.0
        %295 = vmatprep.subr.mxu0 0.0
        %296 = vmatpush2.msra.mxu0 0.0
        %297 = vmatprep.subr.mxu0 0.0
        %298 = vmatpush2.msra.mxu0 0.0
        %299 = vmatprep.subr.mxu0 0.0
        %300 = vmatpush2.msra.mxu0 0.0
        %301 = vmatprep.subr.mxu0 0.0
        %302 = vmatpush2.msra.mxu0 0.0
        %303 = vmatprep.subr.mxu0 0.0
        %304 = vmatpush2.msra.mxu0 0.0
        %305 = vmatprep.mubr.f32.mxu0 0.0
        %306 = vmatmul.mubr.f32.gmra.mxu0 %v230
        %v307 = vpop.f32.mrf.mxu0
        %v308 = vadd.f32 0.0, %v307
        %v309 = vpop.f32.mrf.mxu0
        %310 = vmatprep.mubr.f32.mxu0 0.0
        %311 = vmatmul.mubr.f32.gmra.mxu0 %v233
        %v312 = vpop.f32.mrf.mxu0
        %v313 = vadd.f32 0.0, %v312
        %v314 = vpop.f32.mrf.mxu0
        %315 = vmatprep.mubr.f32.mxu0 0.0
        %316 = vmatmul.mubr.f32.gmra.mxu0 %v236
        %v317 = vpop.f32.mrf.mxu0
        %v318 = vadd.f32 0.0, %v317
        %v319 = vpop.f32.mrf.mxu0
        %320 = vmatprep.mubr.f32.mxu0 0.0
        %321 = vmatmul.mubr.f32.gmra.mxu0 %v239
        %v322 = vpop.f32.mrf.mxu0
        %v323 = vadd.f32 0.0, %v322
        %v324 = vpop.f32.mrf.mxu0
        %325 = vdwg.mxu0
        %326 = vadd.xlane.f32.xlu0 %v308
        %v327 = vpop.xlane.xlu0 %326
        %328 = vadd.xlane.f32.xlu0 %v313
        %v329 = vpop.xlane.xlu0 %328
        %330 = vadd.xlane.f32.xlu0 %v318
        %v331 = vpop.xlane.xlu0 %330
        %332 = vadd.xlane.f32.xlu0 %v323
        %v333 = vpop.xlane.xlu0 %332
        %v334 = vmul.f32 %v327, 0.00390625
        %v335 = vmul.f32 %v329, 0.00390625
        %v336 = vmul.f32 %v331, 0.00390625
        %v337 = vmul.f32 %v333, 0.00390625
        %v338 = vld [vmem:[%s2] sm:$0xff]
        %v339 = vld [vmem:[%s2 + $0x8] sm:$0xff]
        %v340 = vld [vmem:[%s2 + $0x10] sm:$0xff]
        %v341 = vld [vmem:[%s2 + $0x18] sm:$0xff]
        %v342 = vadd.f32 %v334, %v338
        %v343 = vadd.f32 %v335, %v339
        %v344 = vadd.f32 %v336, %v340
        %v345 = vadd.f32 %v337, %v341
        %v346 = vxor.u32 %v342, 2147483648
        %v347 = vxor.u32 %v343, 2147483648
        %v348 = vxor.u32 %v344, 2147483648
        %v349 = vxor.u32 %v345, 2147483648
        %v350 = vmul.f32 %v346, 1.442695
        %v351 = vpow.pop %v350
        %v352 = vmul.f32 %v347, 1.442695
        %v353 = vpow.pop %v352
        %v354 = vmul.f32 %v348, 1.442695
        %v355 = vpow.pop %v354
        %v356 = vmul.f32 %v349, 1.442695
        %v357 = vpow.pop %v356
        %v358 = vadd.f32 %v351, 1.0
        %v359 = vadd.f32 %v353, 1.0
        %v360 = vadd.f32 %v355, 1.0
        %v361 = vadd.f32 %v357, 1.0
        %v362 = vrcp.pop %v358
        %v363 = vmul.f32 1.0, %v362
        %v364 = vrcp.pop %v359
        %v365 = vmul.f32 1.0, %v364
        %v366 = vrcp.pop %v360
        %v367 = vmul.f32 1.0, %v366
        %v368 = vrcp.pop %v361
        %v369 = vmul.f32 1.0, %v368
        %v370 = vld [vmem:[%s166] sm:$0xff]
        %v371 = vld [vmem:[%s166 + $0x8] sm:$0xff]
        %v372 = vld [vmem:[%s166 + $0x10] sm:$0xff]
        %v373 = vld [vmem:[%s166 + $0x18] sm:$0xff]
        %v374 = vld [vmem:[%s166 + $0x20] sm:$0xff]
        %v375 = vld [vmem:[%s166 + $0x28] sm:$0xff]
        %v376 = vld [vmem:[%s166 + $0x30] sm:$0xff]
        %v377 = vld [vmem:[%s166 + $0x38] sm:$0xff]
        %379 = vset.pattern.permute.xlu0 0
        %380 = vperm.xlu0 %379, %v363
        %v381 = vpop.permute.xlu0 %380
        %384 = vset.pattern.permute.xlu0 0
        %385 = vperm.xlu0 %384, %v365
        %v386 = vpop.permute.xlu0 %385
        %389 = vset.pattern.permute.xlu0 0
        %390 = vperm.xlu0 %389, %v367
        %v391 = vpop.permute.xlu0 %390
        %394 = vset.pattern.permute.xlu0 0
        %395 = vperm.xlu0 %394, %v369
        %v396 = vpop.permute.xlu0 %395
        %v398 = vmul.f32 %v370, %v381
        %v399 = vmul.f32 %v371, %v381
        %v400 = vmul.f32 %v372, %v386
        %v401 = vmul.f32 %v373, %v386
        %v402 = vmul.f32 %v374, %v391
        %v403 = vmul.f32 %v375, %v391
        %v404 = vmul.f32 %v376, %v396
        %v405 = vmul.f32 %v377, %v396
        %406 = vst [vmem:[%s188] sm:$0xff] %v398
        %407 = vst [vmem:[%s188 + $0x8] sm:$0xff] %v399
        %408 = vst [vmem:[%s188 + $0x10] sm:$0xff] %v400
        %409 = vst [vmem:[%s188 + $0x18] sm:$0xff] %v401
        %410 = vst [vmem:[%s188 + $0x20] sm:$0xff] %v402
        %411 = vst [vmem:[%s188 + $0x28] sm:$0xff] %v403
        %412 = vst [vmem:[%s188 + $0x30] sm:$0xff] %v404
        %413 = vst [vmem:[%s188 + $0x38] sm:$0xff] %v405
        %s414 = sand.u32 %s96, 1
        %s415 = scalar_lea.sflag [#allocation5], %s414
        %s416 = sand.u32 %s96, 1
        %s417 = smul.addr %s416, 64
        %s418 = scalar_lea.vmem [#allocation6], %s417
        // Predicated region
        $region44: #{tpu_custom_call.1} parent=31 // pred_check
          %p419 = pneg %p106
        $region45: #{tpu_custom_call.1} parent=31 // pred_check_branch
          %421 = sbr.rel (%p419) target = $region47
        $region46: #{tpu_custom_call.1} parent=31 // pred_region
          %s423 = ssub.s32 1024, 1024
          %424 = vsyncadd %s415, %s423
          %s425 = smul.addr %s20, 8
          %s426 = smul.addr %s425, 128
          %s427 = scalar_lea.hbm %s3, %s426
          %s428 = sshll.u32 %s418, 4
          %s429 = int_to_ptr.vmem [resolvable:$true] %s428
          %434 = dma.vmem_to_hbm [thread:$0]  %s429, 1024, %s427, %s415, 256, 256, 16
        $region47: #{tpu_custom_call.1} parent=31 // pred_fallthru
          _
      $region32: #{tpu_custom_call.1} parent=5 // pred_fallthru
        _
      %p435 = scmp.le.s32.totalorder 2, %s15
      // Predicated region
      $region48: #{tpu_custom_call.1} parent=5 // pred_check
        %p436 = pneg %p435
      $region49: #{tpu_custom_call.1} parent=5 // pred_check_branch
        %438 = sbr.rel (%p436) target = $region51
      $region50: #{tpu_custom_call.1} parent=5 // pred_region
        %s439 = ssub.s32 %s15, 2
        // Predicated region
        $region52: #{tpu_custom_call.1} parent=50 // pred_check
          %p440 = pneg %p112
        $region53: #{tpu_custom_call.1} parent=50 // pred_check_branch
          %442 = sbr.rel (%p440) target = $region55
        $region54: #{tpu_custom_call.1} parent=50 // pred_region
          %s443 = sand.u32 %s97, 1
          %s444 = scalar_lea.sflag [#allocation5], %s443
          %s445 = sand.u32 %s97, 1
          %s446 = smul.addr %s445, 64
          %s447 = scalar_lea.vmem [#allocation6], %s446
          %448 = dma.done %s444, 1024
        $region55: #{tpu_custom_call.1} parent=50 // pred_fallthru
          _
      $region51: #{tpu_custom_call.1} parent=5 // pred_fallthru
        _
    $region6: #{tpu_custom_call.1} parent=1 // loop_footer
      %s19 = sadd.s32 1, %s15
    $region7: #{tpu_custom_call.1} parent=1 // loop_footer_branch
      %14 = sbr.rel target = $region3
    $region8: #{tpu_custom_call.1} parent=1 // loop_exit
      _
    %449 = vsyncpa [#allocation4], 1
    %s450 = scalar_lea.sflag [#allocation4], 1
    %451 = vsyncpa %s450, 1
    %452 = vsyncpa [#allocation5], 1
    %s453 = scalar_lea.sflag [#allocation5], 1
    %454 = vsyncpa %s453, 1

</llo_original>
